<compile_context>
chip_gen: v6e
topology: v6e:2x2x1
jax: 0.10.0
libtpu: 0.0.40
codegen_flags: <defaults>
</compile_context>

<pallas_src>
import functools
import math

import jax
import jax.numpy as jnp
from jax.experimental import pallas as pl
from jax.experimental.pallas import tpu as pltpu


# --------------------------------------------------------------------------
# Pallas kernel: one tile of  y = x * sigmoid(beta * x)
# --------------------------------------------------------------------------
def _swish_kernel(x_ref, o_ref, *, beta):
    x = x_ref[...].astype(jnp.float32)          # VPU mul, EUP sigmoid (f32)
    o_ref[...] = (x * jax.nn.sigmoid(beta * x)).astype(o_ref.dtype)


def swish(x, beta=1.0, *, target_block_elems=512 * 1024):
    """Element-wise Swish via a tiled Pallas TPU kernel (matches nn.Module Swish)."""
    if x.ndim == 0:
        xf = x.astype(jnp.float32)
        return (xf * jax.nn.sigmoid(beta * xf)).astype(x.dtype)

    orig_shape = x.shape
    n = x.size

    # Lane-dense 2-D view when possible (unmasked 128-lane stores).
    cols = None
    for c in (2048, 1024, 512, 256, 128):
        if n % c == 0:
            cols = c
            break
    if cols is not None:
        x2 = x.reshape(n // cols, cols)
    else:
        lead = math.prod(orig_shape[:-1]) if x.ndim > 1 else 1
        x2 = x.reshape(lead, orig_shape[-1])

    R, C = x2.shape

    # Column tile: lane-aligned tile if possible, otherwise must be the full dim.
    ct = min(C, 2048) if C % 128 == 0 else C

    # Row tile: multiple of 8, sized so the double-buffered working set stays
    # small; tiny arrays just take the full (always-legal) dimension.
    rt_cap = max(8, min(2048, (target_block_elems // max(ct, 1)) // 8 * 8))
    rt = R if R <= rt_cap else rt_cap

    grid = (pl.cdiv(R, rt), pl.cdiv(C, ct))    # ragged last blocks handled by Pallas

    out2 = pl.pallas_call(
        functools.partial(_swish_kernel, beta=float(beta)),
        out_shape=jax.ShapeDtypeStruct((R, C), x.dtype),
        grid=grid,
        in_specs=[pl.BlockSpec((rt, ct), lambda i, j: (i, j))],
        out_specs=pl.BlockSpec((rt, ct), lambda i, j: (i, j)),
        compiler_params=pltpu.CompilerParams(
            dimension_semantics=("parallel", "parallel")),
    )(x2)
    return out2.reshape(orig_shape)


# --------------------------------------------------------------------------
if __name__ == "__main__":
    key = jax.random.PRNGKey(0)
    k1, k2 = jax.random.split(key)

    # Small 4-D input (e.g. feature maps) — hits the lane-dense path.
    x = jax.random.normal(k1, (2, 4, 16, 16), jnp.float32)
    y = jax.block_until_ready(jax.jit(swish)(x))
    ref = x * jax.nn.sigmoid(x)                         # beta = 1
    assert y.shape == x.shape
    assert bool(jnp.all(jnp.isfinite(y)))
    assert bool(jnp.allclose(y, ref, atol=1e-5, rtol=1e-5))

    # Ragged / non-128-aligned shape with beta != 1 — hits the masked path.
    x_r = jax.random.normal(k2, (7, 33), jnp.float32)
    y_r = jax.block_until_ready(swish(x_r, beta=1.5))
    ref_r = x_r * jax.nn.sigmoid(1.5 * x_r)
    assert bool(jnp.allclose(y_r, ref_r, atol=1e-5, rtol=1e-5))

    print("KERNEL_OK")
</pallas_src>

<mosaic_0001>
module attributes {stable_mosaic.version = 11 : i64} {
  func.func @_swish_kernel(%arg0: i32, %arg1: i32, %arg2: memref<1x2048xf32, #tpu.memory_space<vmem>>, %arg3: memref<1x2048xf32, #tpu.memory_space<vmem>>) attributes {dimension_semantics = [#tpu.dimension_semantics<parallel>, #tpu.dimension_semantics<parallel>], iteration_bounds = array<i64: 1, 1>, scalar_prefetch = 0 : i64, scratch_operands = 0 : i64, tpu.core_type = #tpu.core_type<tc>, window_params = [{transform_indices = @transform_0, window_bounds = array<i64: 1, 2048>}, {transform_indices = @transform_1, window_bounds = array<i64: 1, 2048>}]} {
    %c0 = arith.constant 0 : index
    %c0_0 = arith.constant 0 : index
    %0 = vector.load %arg2[%c0, %c0_0] : memref<1x2048xf32, #tpu.memory_space<vmem>>, vector<1x2048xf32>
    %cst = arith.constant 1.000000e+00 : f32
    %1 = vector.broadcast %cst : f32 to vector<1x2048xf32>
    %2 = arith.mulf %1, %0 : vector<1x2048xf32>
    %3 = arith.negf %2 : vector<1x2048xf32>
    %4 = math.exp %3 : vector<1x2048xf32>
    %cst_1 = arith.constant 1.000000e+00 : f32
    %5 = vector.broadcast %cst_1 : f32 to vector<1x2048xf32>
    %6 = arith.addf %5, %4 : vector<1x2048xf32>
    %7 = arith.divf %5, %6 : vector<1x2048xf32>
    %8 = arith.mulf %0, %7 : vector<1x2048xf32>
    %c0_2 = arith.constant 0 : index
    %c0_3 = arith.constant 0 : index
    %9 = vector.load %arg3[%c0_2, %c0_3] : memref<1x2048xf32, #tpu.memory_space<vmem>>, vector<1x2048xf32>
    tpu.vector_store %arg3[%c0_2, %c0_3], %8 {strides = array<i32>} : memref<1x2048xf32, #tpu.memory_space<vmem>>, vector<1x2048xf32>,
    return
  }
  func.func @transform_0(%arg0: i32, %arg1: i32) -> (i32, i32) {
    %c0_i32 = arith.constant 0 : i32
    return %arg0, %arg1 : i32, i32
  }
  func.func @transform_1(%arg0: i32, %arg1: i32) -> (i32, i32) {
    %c0_i32 = arith.constant 0 : i32
    return %arg0, %arg1 : i32, i32
  }
}

</mosaic_0001>

<llo_original>
// kernel: swish.1
$region0: #{swish.1}
  #allocation0 [shape = 'u32[]', space=smem, size = 0x4, offset = 0x4, fixed_abs, tag = 'smem constant byte address 0x4 - core index']
  #allocation1 [shape = 'u32[144,128]{1,0:T(1,128)}', space=vmem, size = 0x12000, scoped, tag = 'internal scratch']
  %s0 = inlined_call_operand.vmem [shape: f32[1,2048], index: 0, kind: input, shape index: {}]
  %s1 = inlined_call_operand.vmem [shape: f32[1,2048], index: 1, kind: output, shape index: {}]
  %s2 = sld [smem:[#allocation0]]
  $region14: #{swish.1} parent=0
    _
  %s4 = ssub.s32 1, %s2
  %s5 = scalar_select 0, %s4, %s2
  // Predicated region
  $region2: #{swish.1} parent=0 // pred_check
    _
  $region3: #{swish.1} parent=0 // pred_check_branch
    %7 = sbr.rel (0) target = $region5
  $region4: #{swish.1} parent=0 // pred_region
    _
  $region5: #{swish.1} parent=0 // pred_fallthru
    _
  %v8 = vld [vmem:[%s0] sm:$0xff]
  %v9 = vld [vmem:[%s0 + $0x8] sm:$0xff]
  %v10 = vxor.u32 %v8, 2147483648
  %v11 = vxor.u32 %v9, 2147483648
  %v12 = vmul.f32 %v10, 1.442695
  %v13 = vpow.pop %v12
  %v14 = vmul.f32 %v11, 1.442695
  %v15 = vpow.pop %v14
  %v16 = vadd.f32 %v13, 1.0
  %v17 = vadd.f32 %v15, 1.0
  %v18 = vrcp.pop %v16
  %v19 = vmul.f32 1.0, %v18
  %v20 = vrcp.pop %v17
  %v21 = vmul.f32 1.0, %v20
  %v22 = vmul.f32 %v8, %v19
  %v23 = vmul.f32 %v9, %v21
  %24 = vst [vmem:[%s1] sm:$0xff] %v22
  %25 = vst [vmem:[%s1 + $0x8] sm:$0xff] %v23
  // Predicated region
  $region6: #{swish.1} parent=0 // pred_check
    _
  $region7: #{swish.1} parent=0 // pred_check_branch
    %27 = sbr.rel (0) target = $region9
  $region8: #{swish.1} parent=0 // pred_region
    _
  $region9: #{swish.1} parent=0 // pred_fallthru
    _
  // Predicated region
  $region10: #{swish.1} parent=0 // pred_check
    _
  $region11: #{swish.1} parent=0 // pred_check_branch
    %29 = sbr.rel (0) target = $region13
  $region12: #{swish.1} parent=0 // pred_region
    _
  $region13: #{swish.1} parent=0 // pred_fallthru
    _

</llo_original>
